<compile_context>
chip_gen: v6e
topology: v6e:2x2x1
jax: 0.10.0
libtpu: 0.0.40
codegen_flags: <defaults>
</compile_context>

<pallas_src>
import numpy as np
import jax
import jax.numpy as jnp
from jax.experimental import pallas as pl
from jax.experimental.pallas import tpu as pltpu


def _layer_norm(v, gamma, beta, eps=1e-5):
    mu = jnp.mean(v, axis=-1, keepdims=True)
    var = jnp.mean((v - mu) ** 2, axis=-1, keepdims=True)
    return (v - mu) * jax.lax.rsqrt(var + eps) * gamma + beta


# ---------------------------------------------------------------------------
# Kernel 1: LN1 + per-head Q/K/V projections, computed once for all nodes.
# Grid: (H,), one head per step ("parallel" -> independent).
# ---------------------------------------------------------------------------
def qkv_proj_kernel(x_ref, g1_ref, be1_ref,
                    wq_ref, bq_ref, wk_ref, bk_ref, wv_ref, bv_ref,
                    q_ref, k_ref, v_ref):
    f32 = jnp.float32
    bf16 = jnp.bfloat16
    xn = _layer_norm(x_ref[...], g1_ref[...], be1_ref[...]).astype(bf16)

    def proj(w_ref, b_ref):
        return (jnp.dot(xn, w_ref[0], preferred_element_type=f32)
                + b_ref[0]).astype(bf16)

    q_ref[0] = proj(wq_ref, bq_ref)   # Wq/bq already carry the 1/sqrt(Dh) scale
    k_ref[0] = proj(wk_ref, bk_ref)
    v_ref[0] = proj(wv_ref, bv_ref)


# ---------------------------------------------------------------------------
# Kernel 2: attention (one head per grid step, folded into the output
# projection accumulator) + residual + LN2 + FFN + residual (finalized on the
# last head step).  Grid: (N//q_tile, H) = ("parallel", "arbitrary").
# ---------------------------------------------------------------------------
def attn_ffn_kernel(xq_ref, q_ref, k_ref, v_ref, cb_ref, wo_ref, bo_ref,
                    g2_ref, be2_ref, w1_ref, b1_ref, w2_ref, b2_ref,
                    out_ref, acc_ref):
    f32 = jnp.float32
    bf16 = jnp.bfloat16
    h = pl.program_id(1)

    @pl.when(h == 0)
    def _():
        acc_ref[...] = jnp.zeros_like(acc_ref)

    # scores for this head: (tq, N).  Q was pre-scaled by 1/sqrt(Dh) on the host.
    s = jax.lax.dot_general(q_ref[0], k_ref[0], (((1,), (1,)), ((), ())),
                            preferred_element_type=f32)
    s = s + cb_ref[0].astype(f32)                         # spatial + edge bias
    s = s - jnp.max(s, axis=-1, keepdims=True)
    e = jnp.exp(s)
    p = e * pl.reciprocal(jnp.sum(e, axis=-1, keepdims=True), approx=True)

    oh = jnp.dot(p.astype(bf16), v_ref[0], preferred_element_type=f32)     # (tq, Dh)
    # fold this head's slice of the output projection (no concatenate)
    acc_ref[...] += jnp.dot(oh.astype(bf16), wo_ref[0], preferred_element_type=f32)

    @pl.when(h == pl.num_programs(1) - 1)
    def _():
        # h'(l) = MHA(LN(h)) + h
        x_prime = acc_ref[...] + bo_ref[...] + xq_ref[...]
        # h(l) = FFN(LN(h')) + h'
        xn2 = _layer_norm(x_prime, g2_ref[...], be2_ref[...])
        h1 = (jnp.dot(xn2.astype(bf16), w1_ref[...], preferred_element_type=f32)
              + b1_ref[...])
        h1 = jax.nn.gelu(h1, approximate=False)           # exact GELU == torch default
        h2 = (jnp.dot(h1.astype(bf16), w2_ref[...], preferred_element_type=f32)
              + b2_ref[...])
        out_ref[...] = (h2 + x_prime).astype(out_ref.dtype)


def _full_spec(a):
    nd = a.ndim
    return pl.BlockSpec(a.shape, lambda *idx, _nd=nd: (0,) * _nd)


def _vmem_limit_bytes(estimate):
    """Per-generation scoped-VMEM limit: ~56 MiB on v7x (64 MiB/TC), ~100 MiB on v5e/v6e."""
    try:
        cap = int(pltpu.get_tpu_info().vmem_capacity_bytes)
    except Exception:
        cap = 64 * 2 ** 20        # conservative fallback (v7x per-TensorCore)
    ceiling = min(cap - 8 * 2 ** 20, 100 * 2 ** 20)
    floor = min(32 * 2 ** 20, ceiling)
    return int(min(max(int(estimate), floor), ceiling))


def graphormer_encoder_layer(x, b, c, params, *, q_tile=None):
    """x: (N, D) node features; b: (N, N) spatial encoding; c: (H, N, N) edge encoding."""
    N, D = x.shape
    H = c.shape[0]
    Dh = params["wq"].shape[-1]
    F = params["w1"].shape[-1]
    f32 = jnp.float32
    bf16 = jnp.bfloat16

    if q_tile is None:
        # 256 fills the 256-wide MXU on v6e/v7x and amortizes per-step overhead; the
        # per-step VMEM is only O(tq*N + N*Dh) now that heads are a grid axis.
        q_tile = next((t for t in (256, 128) if N % t == 0), N)
    assert N % q_tile == 0
    n_q_tiles = N // q_tile

    # ---- host-side packing (once, outside the kernels) ----
    scale = 1.0 / float(np.sqrt(Dh))
    wq_s = (params["wq"] * scale).astype(bf16)            # (H, D, Dh), scale folded in
    bq_s = (params["bq"] * scale).astype(f32)             # (H, 1, Dh)
    wk_b = params["wk"].astype(bf16)
    wv_b = params["wv"].astype(bf16)
    wo_h = params["wo"].reshape(H, Dh, D).astype(bf16)    # per-head rows of out proj
    w1 = params["w1"].astype(bf16)
    w2 = params["w2"].astype(bf16)
    cb = (c + b[None, :, :]).astype(bf16)                 # (H, N, N) combined bias

    # ---- kernel 1: LN1 + Q/K/V projections (grid over heads) ----
    proj_args = (x, params["g1"], params["be1"],
                 wq_s, bq_s, wk_b, params["bk"], wv_b, params["bv"])
    head_w_spec = pl.BlockSpec((1, D, Dh), lambda h: (h, 0, 0))
    head_b_spec = pl.BlockSpec((1, 1, Dh), lambda h: (h, 0, 0))
    proj_in_specs = [
        _full_spec(x), _full_spec(params["g1"]), _full_spec(params["be1"]),
        head_w_spec, head_b_spec, head_w_spec, head_b_spec, head_w_spec, head_b_spec,
    ]
    qkv_out_spec = pl.BlockSpec((1, N, Dh), lambda h: (h, 0, 0))
    proj_estimate = (2 * (N * D * 4 + 3 * (D * Dh * 2 + Dh * 4) + 3 * N * Dh * 2)
                     + 4 * N * max(D, Dh) * 4)
    q_all, k_all, v_all = pl.pallas_call(
        qkv_proj_kernel,
        out_shape=tuple(jax.ShapeDtypeStruct((H, N, Dh), bf16) for _ in range(3)),
        grid=(H,),
        in_specs=proj_in_specs,
        out_specs=(qkv_out_spec, qkv_out_spec, qkv_out_spec),
        compiler_params=pltpu.CompilerParams(
            dimension_semantics=("parallel",),
            vmem_limit_bytes=_vmem_limit_bytes(proj_estimate),
        ),
    )(*proj_args)

    # ---- kernel 2: attention + FFN (grid over (query tiles, heads)) ----
    attn_args = (x, q_all, k_all, v_all, cb, wo_h, params["bo"],
                 params["g2"], params["be2"], w1, params["b1"], w2, params["b2"])
    attn_in_specs = [
        pl.BlockSpec((q_tile, D), lambda i, h: (i, 0)),           # residual rows
        pl.BlockSpec((1, q_tile, Dh), lambda i, h: (h, i, 0)),    # Q tile, this head
        pl.BlockSpec((1, N, Dh), lambda i, h: (h, 0, 0)),         # K, this head
        pl.BlockSpec((1, N, Dh), lambda i, h: (h, 0, 0)),         # V, this head
        pl.BlockSpec((1, q_tile, N), lambda i, h: (h, i, 0)),     # streamed bias slab
        pl.BlockSpec((1, Dh, D), lambda i, h: (h, 0, 0)),         # out-proj rows, head
    ] + [_full_spec(a) for a in attn_args[6:]]
    out_spec = pl.BlockSpec((q_tile, D), lambda i, h: (i, 0))

    # double-buffered blocks + in-kernel intermediates (scores / exp / probs / FFN / acc)
    block_bytes = sum(int(np.prod(s.block_shape)) * a.dtype.itemsize
                      for a, s in zip(attn_args, attn_in_specs))
    block_bytes += q_tile * D * 4                                 # output block
    intermediates = 4 * q_tile * N * 4 + 4 * q_tile * max(D, F) * 4 + q_tile * D * 4
    attn_estimate = 2 * block_bytes + intermediates

    return pl.pallas_call(
        attn_ffn_kernel,
        out_shape=jax.ShapeDtypeStruct((N, D), jnp.float32),
        grid=(n_q_tiles, H),
        in_specs=attn_in_specs,
        out_specs=out_spec,
        scratch_shapes=[pltpu.VMEM((q_tile, D), jnp.float32)],
        compiler_params=pltpu.CompilerParams(
            dimension_semantics=("parallel", "arbitrary"),
            vmem_limit_bytes=_vmem_limit_bytes(attn_estimate),
        ),
    )(*attn_args)


def graphormer_encoder_reference(x, b, c, params):
    """Pure-JAX f32 replica of the PyTorch forward (for tolerance checking)."""
    def ln(v, g, bta):
        mu = jnp.mean(v, axis=-1, keepdims=True)
        var = jnp.mean((v - mu) ** 2, axis=-1, keepdims=True)
        return (v - mu) * jax.lax.rsqrt(var + 1e-5) * g + bta

    H = c.shape[0]
    xn = ln(x, params["g1"], params["be1"])
    heads = []
    for h in range(H):
        q = xn @ params["wq"][h] + params["bq"][h]
        k = xn @ params["wk"][h] + params["bk"][h]
        v = xn @ params["wv"][h] + params["bv"][h]
        a = (q @ k.T) / (q.shape[-1] ** 0.5) + b + c[h]
        heads.append(jax.nn.softmax(a, axis=-1) @ v)
    attn = jnp.concatenate(heads, axis=-1) @ params["wo"] + params["bo"]
    x_prime = attn + x
    xn2 = ln(x_prime, params["g2"], params["be2"])
    h1 = jax.nn.gelu(xn2 @ params["w1"] + params["b1"], approximate=False)
    return h1 @ params["w2"] + params["b2"] + x_prime


def compute_edge_encoding(edge_vectors, edge_attr, edge_paths, n_nodes, max_path_distance):
    """Host-side replica of EdgeEncoding.forward (Python dict iteration, ragged paths)."""
    edge_vectors = np.asarray(edge_vectors)
    edge_attr = np.asarray(edge_attr)
    H = edge_vectors.shape[0]
    c = np.zeros((H, n_nodes, n_nodes), dtype=np.float32)
    for src in edge_paths:
        for dst in edge_paths[src]:
            path = list(edge_paths[src][dst])[:max_path_distance]
            L = len(path)
            if L == 0:
                continue  # mean of empty -> nan -> nan_to_num -> 0
            ea = edge_attr[path]
            for h in range(H):
                ev = edge_vectors[h, :L]
                c[h, src, dst] = float((ev * ea).sum(axis=1).mean())
    return np.nan_to_num(c)


if __name__ == "__main__":
    N, D, H, F = 8, 32, 4, 64          # nodes, node_dim, n_heads, ffn_dim
    EDGE_DIM, MAX_PATH, E = 16, 5, 12  # edge feature dim, max path distance, n edges

    key = jax.random.PRNGKey(0)
    ks = jax.random.split(key, 20)

    x = jax.random.normal(ks[0], (N, D), jnp.float32)
    b_spatial = 0.1 * jax.random.normal(ks[1], (N, N), jnp.float32)
    edge_attr = jax.random.normal(ks[2], (E, EDGE_DIM), jnp.float32)
    edge_vectors = jax.random.normal(ks[3], (H, MAX_PATH, EDGE_DIM), jnp.float32)

    # synthetic pairwise node paths (dict-of-dicts of edge indices), as in PyG Graphormer
    edge_paths = {
        0: {1: [0], 2: [0, 1], 5: [0, 1, 2]},
        1: {3: [3, 4]},
        2: {4: [5], 6: [5, 6, 7]},
        3: {7: [8, 9, 10, 11]},
        4: {0: [2, 1, 0]},
    }
    c = jnp.asarray(compute_edge_encoding(edge_vectors, edge_attr, edge_paths, N, MAX_PATH))

    def lin(k, fan_in, shape):
        bound = 1.0 / np.sqrt(fan_in)
        return jax.random.uniform(k, shape, jnp.float32, -bound, bound)

    params = {
        # per-head Q/K/V projections (stored as (in, out) for x @ W)
        "wq": lin(ks[4], D, (H, D, D)), "bq": lin(ks[5], D, (H, 1, D)),
        "wk": lin(ks[6], D, (H, D, D)), "bk": lin(ks[7], D, (H, 1, D)),
        "wv": lin(ks[8], D, (H, D, D)), "bv": lin(ks[9], D, (H, 1, D)),
        # output projection of multi-head attention: (H*D) -> D
        "wo": lin(ks[10], H * D, (H * D, D)), "bo": lin(ks[11], H * D, (1, D)),
        # LayerNorm params (torch default init: gamma=1, beta=0)
        "g1": jnp.ones((1, D), jnp.float32), "be1": jnp.zeros((1, D), jnp.float32),
        "g2": jnp.ones((1, D), jnp.float32), "be2": jnp.zeros((1, D), jnp.float32),
        # FFN: D -> F -> D
        "w1": lin(ks[12], D, (D, F)), "b1": lin(ks[13], D, (1, F)),
        "w2": lin(ks[14], F, (F, D)), "b2": lin(ks[15], F, (1, D)),
    }

    out = graphormer_encoder_layer(x, b_spatial, c, params)
    out = jax.block_until_ready(out)

    ref = graphormer_encoder_reference(x, b_spatial, c, params)
    assert out.shape == (N, D)
    assert bool(jnp.all(jnp.isfinite(out)))
    max_err = float(jnp.max(jnp.abs(out - ref)))
    # bf16 MXU operands / bf16 K,V,bias + approx reciprocal -> small bounded deviation
    assert max_err < 0.25, f"max abs error vs f32 reference: {max_err}"
    print("KERNEL_OK")
</pallas_src>

<mosaic_0001>
module attributes {stable_mosaic.version = 11 : i64} {
  func.func @qkv_proj_kernel(%arg0: i32, %arg1: memref<8x32xf32, #tpu.memory_space<vmem>>, %arg2: memref<1x32xf32, #tpu.memory_space<vmem>>, %arg3: memref<1x32xf32, #tpu.memory_space<vmem>>, %arg4: memref<1x32x32xbf16, #tpu.memory_space<vmem>>, %arg5: memref<1x1x32xf32, #tpu.memory_space<vmem>>, %arg6: memref<1x32x32xbf16, #tpu.memory_space<vmem>>, %arg7: memref<1x1x32xf32, #tpu.memory_space<vmem>>, %arg8: memref<1x32x32xbf16, #tpu.memory_space<vmem>>, %arg9: memref<1x1x32xf32, #tpu.memory_space<vmem>>, %arg10: memref<1x8x32xbf16, #tpu.memory_space<vmem>>, %arg11: memref<1x8x32xbf16, #tpu.memory_space<vmem>>, %arg12: memref<1x8x32xbf16, #tpu.memory_space<vmem>>) attributes {dimension_semantics = [#tpu.dimension_semantics<parallel>], iteration_bounds = array<i64: 4>, scalar_prefetch = 0 : i64, scratch_operands = 0 : i64, tpu.core_type = #tpu.core_type<tc>, window_params = [{pipeline_mode = #tpu.pipeline_mode<synchronous>, transform_indices = @transform_0, window_bounds = array<i64: 8, 32>}, {pipeline_mode = #tpu.pipeline_mode<synchronous>, transform_indices = @transform_1, window_bounds = array<i64: 1, 32>}, {pipeline_mode = #tpu.pipeline_mode<synchronous>, transform_indices = @transform_2, window_bounds = array<i64: 1, 32>}, {transform_indices = @transform_3, window_bounds = array<i64: 1, 32, 32>}, {transform_indices = @transform_4, window_bounds = array<i64: 1, 1, 32>}, {transform_indices = @transform_5, window_bounds = array<i64: 1, 32, 32>}, {transform_indices = @transform_6, window_bounds = array<i64: 1, 1, 32>}, {transform_indices = @transform_7, window_bounds = array<i64: 1, 32, 32>}, {transform_indices = @transform_8, window_bounds = array<i64: 1, 1, 32>}, {transform_indices = @transform_9, window_bounds = array<i64: 1, 8, 32>}, {transform_indices = @transform_10, window_bounds = array<i64: 1, 8, 32>}, {transform_indices = @transform_11, window_bounds = array<i64: 1, 8, 32>}]} {
    %c0 = arith.constant 0 : index
    %c0_0 = arith.constant 0 : index
    %0 = vector.load %arg1[%c0, %c0_0] : memref<8x32xf32, #tpu.memory_space<vmem>>, vector<8x32xf32>
    %c0_1 = arith.constant 0 : index
    %c0_2 = arith.constant 0 : index
    %1 = vector.load %arg2[%c0_1, %c0_2] : memref<1x32xf32, #tpu.memory_space<vmem>>, vector<1x32xf32>
    %c0_3 = arith.constant 0 : index
    %c0_4 = arith.constant 0 : index
    %2 = vector.load %arg3[%c0_3, %c0_4] : memref<1x32xf32, #tpu.memory_space<vmem>>, vector<1x32xf32>
    %cst = arith.constant dense<0.000000e+00> : vector<8xf32>
    %3 = vector.multi_reduction <add>, %0, %cst [1] : vector<8x32xf32> to vector<8xf32>
    %4 = vector.shape_cast %3 : vector<8xf32> to vector<8x1xf32>
    %cst_5 = arith.constant 3.200000e+01 : f32
    %5 = vector.broadcast %cst_5 : f32 to vector<8x1xf32>
    %6 = arith.divf %4, %5 : vector<8x1xf32>
    %7 = vector.broadcast %6 : vector<8x1xf32> to vector<8x32xf32>
    %8 = arith.subf %0, %7 : vector<8x32xf32>
    %9 = arith.mulf %8, %8 : vector<8x32xf32>
    %cst_6 = arith.constant dense<0.000000e+00> : vector<8xf32>
    %10 = vector.multi_reduction <add>, %9, %cst_6 [1] : vector<8x32xf32> to vector<8xf32>
    %11 = vector.shape_cast %10 : vector<8xf32> to vector<8x1xf32>
    %cst_7 = arith.constant 3.200000e+01 : f32
    %12 = vector.broadcast %cst_7 : f32 to vector<8x1xf32>
    %13 = arith.divf %11, %12 : vector<8x1xf32>
    %14 = vector.broadcast %6 : vector<8x1xf32> to vector<8x32xf32>
    %15 = arith.subf %0, %14 : vector<8x32xf32>
    %cst_8 = arith.constant 9.99999974E-6 : f32
    %16 = vector.broadcast %cst_8 : f32 to vector<8x1xf32>
    %17 = arith.addf %13, %16 : vector<8x1xf32>
    %18 = math.rsqrt %17 : vector<8x1xf32>
    %19 = vector.broadcast %18 : vector<8x1xf32> to vector<8x32xf32>
    %20 = arith.mulf %15, %19 : vector<8x32xf32>
    %21 = vector.broadcast %1 : vector<1x32xf32> to vector<8x32xf32>
    %22 = arith.mulf %20, %21 : vector<8x32xf32>
    %23 = vector.broadcast %2 : vector<1x32xf32> to vector<8x32xf32>
    %24 = arith.addf %22, %23 : vector<8x32xf32>
    %25 = arith.truncf %24 : vector<8x32xf32> to vector<8x32xbf16>
    %c0_9 = arith.constant 0 : index
    %c0_10 = arith.constant 0 : index
    %c0_11 = arith.constant 0 : index
    %26 = vector.load %arg4[%c0_9, %c0_10, %c0_11] : memref<1x32x32xbf16, #tpu.memory_space<vmem>>, vector<1x32x32xbf16>
    %27 = vector.shape_cast %26 : vector<1x32x32xbf16> to vector<32x32xbf16>
    %cst_12 = arith.constant dense<0.000000e+00> : vector<8x32xf32>
    %28 = tpu.matmul %25, %27, %cst_12 {dimension_numbers = #tpu.dot_dimension_numbers<[1], [0], [0], [1], [0, 0, 1, 1], [], []>} : vector<8x32xbf16>, vector<32x32xbf16>, vector<8x32xf32> -> vector<8x32xf32>
    %c0_13 = arith.constant 0 : index
    %c0_14 = arith.constant 0 : index
    %c0_15 = arith.constant 0 : index
    %29 = vector.load %arg5[%c0_13, %c0_14, %c0_15] : memref<1x1x32xf32, #tpu.memory_space<vmem>>, vector<1x1x32xf32>
    %30 = vector.shape_cast %29 : vector<1x1x32xf32> to vector<1x32xf32>
    %31 = vector.broadcast %30 : vector<1x32xf32> to vector<8x32xf32>
    %32 = arith.addf %28, %31 : vector<8x32xf32>
    %33 = arith.truncf %32 : vector<8x32xf32> to vector<8x32xbf16>
    %c0_16 = arith.constant 0 : index
    %c0_17 = arith.constant 0 : index
    %c0_18 = arith.constant 0 : index
    %34 = vector.load %arg10[%c0_16, %c0_17, %c0_18] : memref<1x8x32xbf16, #tpu.memory_space<vmem>>, vector<1x8x32xbf16>
    %35 = vector.shape_cast %34 : vector<1x8x32xbf16> to vector<8x32xbf16>
    %36 = vector.shape_cast %33 : vector<8x32xbf16> to vector<1x8x32xbf16>
    tpu.vector_store %arg10[%c0_16, %c0_17, %c0_18], %36 {strides = array<i32>} : memref<1x8x32xbf16, #tpu.memory_space<vmem>>, vector<1x8x32xbf16>,
    %c0_19 = arith.constant 0 : index
    %c0_20 = arith.constant 0 : index
    %c0_21 = arith.constant 0 : index
    %37 = vector.load %arg6[%c0_19, %c0_20, %c0_21] : memref<1x32x32xbf16, #tpu.memory_space<vmem>>, vector<1x32x32xbf16>
    %38 = vector.shape_cast %37 : vector<1x32x32xbf16> to vector<32x32xbf16>
    %cst_22 = arith.constant dense<0.000000e+00> : vector<8x32xf32>
    %39 = tpu.matmul %25, %38, %cst_22 {dimension_numbers = #tpu.dot_dimension_numbers<[1], [0], [0], [1], [0, 0, 1, 1], [], []>} : vector<8x32xbf16>, vector<32x32xbf16>, vector<8x32xf32> -> vector<8x32xf32>
    %c0_23 = arith.constant 0 : index
    %c0_24 = arith.constant 0 : index
    %c0_25 = arith.constant 0 : index
    %40 = vector.load %arg7[%c0_23, %c0_24, %c0_25] : memref<1x1x32xf32, #tpu.memory_space<vmem>>, vector<1x1x32xf32>
    %41 = vector.shape_cast %40 : vector<1x1x32xf32> to vector<1x32xf32>
    %42 = vector.broadcast %41 : vector<1x32xf32> to vector<8x32xf32>
    %43 = arith.addf %39, %42 : vector<8x32xf32>
    %44 = arith.truncf %43 : vector<8x32xf32> to vector<8x32xbf16>
    %c0_26 = arith.constant 0 : index
    %c0_27 = arith.constant 0 : index
    %c0_28 = arith.constant 0 : index
    %45 = vector.load %arg11[%c0_26, %c0_27, %c0_28] : memref<1x8x32xbf16, #tpu.memory_space<vmem>>, vector<1x8x32xbf16>
    %46 = vector.shape_cast %45 : vector<1x8x32xbf16> to vector<8x32xbf16>
    %47 = vector.shape_cast %44 : vector<8x32xbf16> to vector<1x8x32xbf16>
    tpu.vector_store %arg11[%c0_26, %c0_27, %c0_28], %47 {strides = array<i32>} : memref<1x8x32xbf16, #tpu.memory_space<vmem>>, vector<1x8x32xbf16>,
    %c0_29 = arith.constant 0 : index
    %c0_30 = arith.constant 0 : index
    %c0_31 = arith.constant 0 : index
    %48 = vector.load %arg8[%c0_29, %c0_30, %c0_31] : memref<1x32x32xbf16, #tpu.memory_space<vmem>>, vector<1x32x32xbf16>
    %49 = vector.shape_cast %48 : vector<1x32x32xbf16> to vector<32x32xbf16>
    %cst_32 = arith.constant dense<0.000000e+00> : vector<8x32xf32>
    %50 = tpu.matmul %25, %49, %cst_32 {dimension_numbers = #tpu.dot_dimension_numbers<[1], [0], [0], [1], [0, 0, 1, 1], [], []>} : vector<8x32xbf16>, vector<32x32xbf16>, vector<8x32xf32> -> vector<8x32xf32>
    %c0_33 = arith.constant 0 : index
    %c0_34 = arith.constant 0 : index
    %c0_35 = arith.constant 0 : index
    %51 = vector.load %arg9[%c0_33, %c0_34, %c0_35] : memref<1x1x32xf32, #tpu.memory_space<vmem>>, vector<1x1x32xf32>
    %52 = vector.shape_cast %51 : vector<1x1x32xf32> to vector<1x32xf32>
    %53 = vector.broadcast %52 : vector<1x32xf32> to vector<8x32xf32>
    %54 = arith.addf %50, %53 : vector<8x32xf32>
    %55 = arith.truncf %54 : vector<8x32xf32> to vector<8x32xbf16>
    %c0_36 = arith.constant 0 : index
    %c0_37 = arith.constant 0 : index
    %c0_38 = arith.constant 0 : index
    %56 = vector.load %arg12[%c0_36, %c0_37, %c0_38] : memref<1x8x32xbf16, #tpu.memory_space<vmem>>, vector<1x8x32xbf16>
    %57 = vector.shape_cast %56 : vector<1x8x32xbf16> to vector<8x32xbf16>
    %58 = vector.shape_cast %55 : vector<8x32xbf16> to vector<1x8x32xbf16>
    tpu.vector_store %arg12[%c0_36, %c0_37, %c0_38], %58 {strides = array<i32>} : memref<1x8x32xbf16, #tpu.memory_space<vmem>>, vector<1x8x32xbf16>,
    return
  }
  func.func @transform_0(%arg0: i32) -> (i32, i32) {
    %c0_i32 = arith.constant 0 : i32
    %c0_i32_0 = arith.constant 0 : i32
    %c0_i32_1 = arith.constant 0 : i32
    return %c0_i32, %c0_i32_0 : i32, i32
  }
  func.func @transform_1(%arg0: i32) -> (i32, i32) {
    %c0_i32 = arith.constant 0 : i32
    %c0_i32_0 = arith.constant 0 : i32
    %c0_i32_1 = arith.constant 0 : i32
    return %c0_i32, %c0_i32_0 : i32, i32
  }
  func.func @transform_2(%arg0: i32) -> (i32, i32) {
    %c0_i32 = arith.constant 0 : i32
    %c0_i32_0 = arith.constant 0 : i32
    %c0_i32_1 = arith.constant 0 : i32
    return %c0_i32, %c0_i32_0 : i32, i32
  }
  func.func @transform_3(%arg0: i32) -> (i32, i32, i32) {
    %c0_i32 = arith.constant 0 : i32
    %c0_i32_0 = arith.constant 0 : i32
    %c0_i32_1 = arith.constant 0 : i32
    return %arg0, %c0_i32, %c0_i32_0 : i32, i32, i32
  }
  func.func @transform_4(%arg0: i32) -> (i32, i32, i32) {
    %c0_i32 = arith.constant 0 : i32
    %c0_i32_0 = arith.constant 0 : i32
    %c0_i32_1 = arith.constant 0 : i32
    return %arg0, %c0_i32, %c0_i32_0 : i32, i32, i32
  }
  func.func @transform_5(%arg0: i32) -> (i32, i32, i32) {
    %c0_i32 = arith.constant 0 : i32
    %c0_i32_0 = arith.constant 0 : i32
    %c0_i32_1 = arith.constant 0 : i32
    return %arg0, %c0_i32, %c0_i32_0 : i32, i32, i32
  }
  func.func @transform_6(%arg0: i32) -> (i32, i32, i32) {
    %c0_i32 = arith.constant 0 : i32
    %c0_i32_0 = arith.constant 0 : i32
    %c0_i32_1 = arith.constant 0 : i32
    return %arg0, %c0_i32, %c0_i32_0 : i32, i32, i32
  }
  func.func @transform_7(%arg0: i32) -> (i32, i32, i32) {
    %c0_i32 = arith.constant 0 : i32
    %c0_i32_0 = arith.constant 0 : i32
    %c0_i32_1 = arith.constant 0 : i32
    return %arg0, %c0_i32, %c0_i32_0 : i32, i32, i32
  }
  func.func @transform_8(%arg0: i32) -> (i32, i32, i32) {
    %c0_i32 = arith.constant 0 : i32
    %c0_i32_0 = arith.constant 0 : i32
    %c0_i32_1 = arith.constant 0 : i32
    return %arg0, %c0_i32, %c0_i32_0 : i32, i32, i32
  }
  func.func @transform_9(%arg0: i32) -> (i32, i32, i32) {
    %c0_i32 = arith.constant 0 : i32
    %c0_i32_0 = arith.constant 0 : i32
    %c0_i32_1 = arith.constant 0 : i32
    return %arg0, %c0_i32, %c0_i32_0 : i32, i32, i32
  }
  func.func @transform_10(%arg0: i32) -> (i32, i32, i32) {
    %c0_i32 = arith.constant 0 : i32
    %c0_i32_0 = arith.constant 0 : i32
    %c0_i32_1 = arith.constant 0 : i32
    return %arg0, %c0_i32, %c0_i32_0 : i32, i32, i32
  }
  func.func @transform_11(%arg0: i32) -> (i32, i32, i32) {
    %c0_i32 = arith.constant 0 : i32
    %c0_i32_0 = arith.constant 0 : i32
    %c0_i32_1 = arith.constant 0 : i32
    return %arg0, %c0_i32, %c0_i32_0 : i32, i32, i32
  }
}

</mosaic_0001>

<llo_original>
// kernel: tpu_custom_call.1
$region0: #{tpu_custom_call.1}
  #allocation0 [shape = 'u32[]', space=smem, size = 0x4, offset = 0x4, fixed_abs, tag = 'smem constant byte address 0x4 - core index']
  #allocation1 [shape = 'u32[144,128]{1,0:T(1,128)}', space=vmem, size = 0x12000, scoped, tag = 'internal scratch']
  %s0 = inlined_call_operand.hbm [shape: f32[8,32], index: 0, kind: input, shape index: {}]
  %s1 = inlined_call_operand.hbm [shape: f32[1,32], index: 1, kind: input, shape index: {}]
  %s2 = inlined_call_operand.hbm [shape: f32[1,32], index: 2, kind: input, shape index: {}]
  %s3 = inlined_call_operand.hbm [shape: bf16[4,32,32], index: 3, kind: input, shape index: {}]
  %s4 = inlined_call_operand.vmem [shape: f32[4,1,32], index: 4, kind: input, shape index: {}]
  %s5 = inlined_call_operand.hbm [shape: bf16[4,32,32], index: 5, kind: input, shape index: {}]
  %s6 = inlined_call_operand.vmem [shape: f32[4,1,32], index: 6, kind: input, shape index: {}]
  %s7 = inlined_call_operand.hbm [shape: bf16[4,32,32], index: 7, kind: input, shape index: {}]
  %s8 = inlined_call_operand.vmem [shape: f32[4,1,32], index: 8, kind: input, shape index: {}]
  %s9 = inlined_call_operand.hbm [shape: bf16[4,8,32], index: 9, kind: output, shape index: {0}]
  %s10 = inlined_call_operand.hbm [shape: bf16[4,8,32], index: 10, kind: output, shape index: {1}]
  %s11 = inlined_call_operand.hbm [shape: bf16[4,8,32], index: 11, kind: output, shape index: {2}]
  %12 = xla_tuple %s9, %s10, %s11
  %s13 = sld [smem:[#allocation0]]
  $region109: #{tpu_custom_call.1} parent=0
    _
  %s15 = ssub.s32 1, %s13
  %s16 = scalar_select 0, %s15, %s13
  $region1: #{tpu_custom_call.1} parent=0
    #allocation2 [shape = 'u8[4096]{0}', space=vmem, size = 0x1000, scoped, tag = 'input window, operand 0, single buffered']
    #allocation3 [shape = 's32[2]{0}', space=sflag, size = 0x8, scoped, tag = 'scoped memory for tpu_custom_call.1']
    #allocation4 [shape = 's32[2]{0}', space=sflag, size = 0x8, scoped, tag = 'scoped memory for tpu_custom_call.1']
    #allocation5 [shape = 'u8[512]{0}', space=vmem, size = 0x400, scoped, tag = 'input window, operand 1, single buffered']
    #allocation6 [shape = 's32[1]{0}', space=sflag, size = 0x4, scoped, tag = 'scoped memory for tpu_custom_call.1']
    #allocation7 [shape = 'u8[512]{0}', space=vmem, size = 0x400, scoped, tag = 'input window, operand 2, single buffered']
    #allocation8 [shape = 'u8[16384]{0}', space=vmem, size = 0x4000, scoped, tag = 'input window, operand 3']
    #allocation9 [shape = 's32[2]{0}', space=sflag, size = 0x8, scoped, tag = 'scoped memory for tpu_custom_call.1']
    #allocation10 [shape = 'u8[16384]{0}', space=vmem, size = 0x4000, scoped, tag = 'input window, operand 5']
    #allocation11 [shape = 'u8[16384]{0}', space=vmem, size = 0x4000, scoped, tag = 'input window, operand 7']
    #allocation12 [shape = 's32[2]{0}', space=sflag, size = 0x8, scoped, tag = 'scoped memory for tpu_custom_call.1']
    #allocation13 [shape = 'u8[4096]{0}', space=vmem, size = 0x1000, scoped, tag = 'output window, operand 0']
    #allocation14 [shape = 'u8[4096]{0}', space=vmem, size = 0x1000, scoped, tag = 'output window, operand 1']
    #allocation15 [shape = 's32[2]{0}', space=sflag, size = 0x8, scoped, tag = 'scoped memory for tpu_custom_call.1']
    #allocation16 [shape = 'u8[4096]{0}', space=vmem, size = 0x1000, scoped, tag = 'output window, operand 2']
    %17 = vsyncpa [#allocation3], 0
    %18 = vsyncpa [#allocation6], 0
    %19 = vsyncpa [#allocation9], 0
    %s20 = scalar_lea.sflag [#allocation9], 1
    %21 = vsyncpa %s20, 0
    %22 = vsyncpa [#allocation12], 0
    %s23 = scalar_lea.sflag [#allocation12], 1
    %24 = vsyncpa %s23, 0
    %25 = vsyncpa [#allocation4], 0
    %s26 = scalar_lea.sflag [#allocation4], 1
    %27 = vsyncpa %s26, 0
    %28 = vsyncpa [#allocation15], 0
    %s29 = scalar_lea.sflag [#allocation15], 1
    %30 = vsyncpa %s29, 0
    loop: start=0, step=1, limit=6
    $region2: #{tpu_custom_call.1} parent=1 // loop_pre_header
      _
    $region3: #{tpu_custom_call.1} parent=1 // loop_header
      %s32 = sphi 0, %s36
      %p33 = scmp.ge.s32.totalorder %s32, 6
      %s40 = sphi 0, %s40
      %s42 = sphi 0, %s40
      %s43 = sphi 0, %s42
      %s57 = sphi 0, %s43
      %s61 = sphi 0, %s61
      %s63 = sphi 0, %s61
      %s64 = sphi 0, %s63
      %s78 = sphi 0, %s64
      %s82 = sphi 0, %s82
      %s84 = sphi 0, %s82
      %s85 = sphi 0, %s84
      %s99 = sphi 0, %s85
      %s105 = sphi 0, %s107
      %s108 = sphi 0, %s105
      %s109 = sphi 0, %s108
      %s125 = sphi 0, %s109
      %s131 = sphi 0, %s133
      %s134 = sphi 0, %s131
      %s135 = sphi 0, %s134
      %s151 = sphi 0, %s135
      %s157 = sphi 0, %s159
      %s160 = sphi 0, %s157
      %s161 = sphi 0, %s160
      %s177 = sphi 0, %s161
      %s183 = sphi 0, %s185
      %s186 = sphi 0, %s183
      %s187 = sphi 0, %s186
      %s203 = sphi 0, %s187
      %s209 = sphi 0, %s211
      %s212 = sphi 0, %s209
      %s213 = sphi 0, %s212
      %s229 = sphi 0, %s213
      %s235 = sphi 0, %s237
      %s238 = sphi 0, %s235
      %s239 = sphi 0, %s238
      %s255 = sphi 0, %s239
      %s261 = sphi 0, %s263
      %s264 = sphi 0, %s261
      %s265 = sphi 0, %s264
      %s281 = sphi 0, %s265
      %s287 = sphi 0, %s289
      %s290 = sphi 0, %s287
      %s291 = sphi 0, %s290
      %s307 = sphi 0, %s291
      %s313 = sphi 0, %s315
      %s316 = sphi 0, %s313
      %s317 = sphi 0, %s316
      %s333 = sphi 0, %s317
    $region4: #{tpu_custom_call.1} parent=1 // loop_header_branch
      %35 = sbr.rel (%p33) target = $region8
    $region5: #{tpu_custom_call.1} parent=1 // loop_body
      %s37 = ssub.s32 %s32, 1
      %s38 = ssub.s32 %s32, 2
      %s39 = sadd.s32 %s32, 1
      %s41 = sadd.s32 %s40, 1
      %p44 = scmp.eq.s32.totalorder %s32, 3
      %p45 = scmp.ne.s32.totalorder %s40, %s42
      %p46 = scmp.eq.s32.totalorder %s32, 0
      %p47 = por %p45, %p46
      %p48 = scmp.ne.s32.totalorder %s40, %s42
      %p49 = scmp.eq.s32.totalorder %s37, 3
      %p50 = por %p48, %p49
      %p51 = scmp.ne.s32.totalorder %s42, %s43
      %p52 = scmp.eq.s32.totalorder %s37, 0
      %p53 = por %p51, %p52
      %p54 = scmp.ne.s32.totalorder %s42, %s43
      %p55 = scmp.eq.s32.totalorder %s38, 3
      %p56 = por %p54, %p55
      %p58 = scmp.ne.s32.totalorder %s43, %s57
      %p59 = scmp.eq.s32.totalorder %s38, 0
      %p60 = por %p58, %p59
      %s62 = sadd.s32 %s61, 1
      %p65 = scmp.eq.s32.totalorder %s32, 3
      %p66 = scmp.ne.s32.totalorder %s61, %s63
      %p67 = scmp.eq.s32.totalorder %s32, 0
      %p68 = por %p66, %p67
      %p69 = scmp.ne.s32.totalorder %s61, %s63
      %p70 = scmp.eq.s32.totalorder %s37, 3
      %p71 = por %p69, %p70
      %p72 = scmp.ne.s32.totalorder %s63, %s64
      %p73 = scmp.eq.s32.totalorder %s37, 0
      %p74 = por %p72, %p73
      %p75 = scmp.ne.s32.totalorder %s63, %s64
      %p76 = scmp.eq.s32.totalorder %s38, 3
      %p77 = por %p75, %p76
      %p79 = scmp.ne.s32.totalorder %s64, %s78
      %p80 = scmp.eq.s32.totalorder %s38, 0
      %p81 = por %p79, %p80
      %s83 = sadd.s32 %s82, 1
      %p86 = scmp.eq.s32.totalorder %s32, 3
      %p87 = scmp.ne.s32.totalorder %s82, %s84
      %p88 = scmp.eq.s32.totalorder %s32, 0
      %p89 = por %p87, %p88
      %p90 = scmp.ne.s32.totalorder %s82, %s84
      %p91 = scmp.eq.s32.totalorder %s37, 3
      %p92 = por %p90, %p91
      %p93 = scmp.ne.s32.totalorder %s84, %s85
      %p94 = scmp.eq.s32.totalorder %s37, 0
      %p95 = por %p93, %p94
      %p96 = scmp.ne.s32.totalorder %s84, %s85
      %p97 = scmp.eq.s32.totalorder %s38, 3
      %p98 = por %p96, %p97
      %p100 = scmp.ne.s32.totalorder %s85, %s99
      %p101 = scmp.eq.s32.totalorder %s38, 0
      %p102 = por %p100, %p101
      %s103 = ssub.s32 %s32, %s39
      %p104 = scmp.eq.s32.totalorder %s103, 0
      %s106 = sadd.s32 %s105, 1
      %s107 = scalar_select %p104, %s105, %s106
      %p110 = pneg %p104
      %p111 = scmp.eq.s32.totalorder %s32, 3
      %p112 = por %p110, %p111
      %p113 = scmp.ne.s32.totalorder %s105, %s108
      %p114 = scmp.eq.s32.totalorder %s32, 0
      %p115 = por %p113, %p114
      %p116 = scmp.ne.s32.totalorder %s105, %s108
      %p117 = scmp.eq.s32.totalorder %s37, 3
      %p118 = por %p116, %p117
      %p119 = scmp.ne.s32.totalorder %s108, %s109
      %p120 = scmp.eq.s32.totalorder %s37, 0
      %p121 = por %p119, %p120
      %p122 = scmp.ne.s32.totalorder %s108, %s109
      %p123 = scmp.eq.s32.totalorder %s38, 3
      %p124 = por %p122, %p123
      %p126 = scmp.ne.s32.totalorder %s109, %s125
      %p127 = scmp.eq.s32.totalorder %s38, 0
      %p128 = por %p126, %p127
      %s129 = ssub.s32 %s32, %s39
      %p130 = scmp.eq.s32.totalorder %s129, 0
      %s132 = sadd.s32 %s131, 1
      %s133 = scalar_select %p130, %s131, %s132
      %p136 = pneg %p130
      %p137 = scmp.eq.s32.totalorder %s32, 3
      %p138 = por %p136, %p137
      %p139 = scmp.ne.s32.totalorder %s131, %s134
      %p140 = scmp.eq.s32.totalorder %s32, 0
      %p141 = por %p139, %p140
      %p142 = scmp.ne.s32.totalorder %s131, %s134
      %p143 = scmp.eq.s32.totalorder %s37, 3
      %p144 = por %p142, %p143
      %p145 = scmp.ne.s32.totalorder %s134, %s135
      %p146 = scmp.eq.s32.totalorder %s37, 0
      %p147 = por %p145, %p146
      %p148 = scmp.ne.s32.totalorder %s134, %s135
      %p149 = scmp.eq.s32.totalorder %s38, 3
      %p150 = por %p148, %p149
      %p152 = scmp.ne.s32.totalorder %s135, %s151
      %p153 = scmp.eq.s32.totalorder %s38, 0
      %p154 = por %p152, %p153
      %s155 = ssub.s32 %s32, %s39
      %p156 = scmp.eq.s32.totalorder %s155, 0
      %s158 = sadd.s32 %s157, 1
      %s159 = scalar_select %p156, %s157, %s158
      %p162 = pneg %p156
      %p163 = scmp.eq.s32.totalorder %s32, 3
      %p164 = por %p162, %p163
      %p165 = scmp.ne.s32.totalorder %s157, %s160
      %p166 = scmp.eq.s32.totalorder %s32, 0
      %p167 = por %p165, %p166
      %p168 = scmp.ne.s32.totalorder %s157, %s160
      %p169 = scmp.eq.s32.totalorder %s37, 3
      %p170 = por %p168, %p169
      %p171 = scmp.ne.s32.totalorder %s160, %s161
      %p172 = scmp.eq.s32.totalorder %s37, 0
      %p173 = por %p171, %p172
      %p174 = scmp.ne.s32.totalorder %s160, %s161
      %p175 = scmp.eq.s32.totalorder %s38, 3
      %p176 = por %p174, %p175
      %p178 = scmp.ne.s32.totalorder %s161, %s177
      %p179 = scmp.eq.s32.totalorder %s38, 0
      %p180 = por %p178, %p179
      %s181 = ssub.s32 %s32, %s39
      %p182 = scmp.eq.s32.totalorder %s181, 0
      %s184 = sadd.s32 %s183, 1
      %s185 = scalar_select %p182, %s183, %s184
      %p188 = pneg %p182
      %p189 = scmp.eq.s32.totalorder %s32, 3
      %p190 = por %p188, %p189
      %p191 = scmp.ne.s32.totalorder %s183, %s186
      %p192 = scmp.eq.s32.totalorder %s32, 0
      %p193 = por %p191, %p192
      %p194 = scmp.ne.s32.totalorder %s183, %s186
      %p195 = scmp.eq.s32.totalorder %s37, 3
      %p196 = por %p194, %p195
      %p197 = scmp.ne.s32.totalorder %s186, %s187
      %p198 = scmp.eq.s32.totalorder %s37, 0
      %p199 = por %p197, %p198
      %p200 = scmp.ne.s32.totalorder %s186, %s187
      %p201 = scmp.eq.s32.totalorder %s38, 3
      %p202 = por %p200, %p201
      %p204 = scmp.ne.s32.totalorder %s187, %s203
      %p205 = scmp.eq.s32.totalorder %s38, 0
      %p206 = por %p204, %p205
      %s207 = ssub.s32 %s32, %s39
      %p208 = scmp.eq.s32.totalorder %s207, 0
      %s210 = sadd.s32 %s209, 1
      %s211 = scalar_select %p208, %s209, %s210
      %p214 = pneg %p208
      %p215 = scmp.eq.s32.totalorder %s32, 3
      %p216 = por %p214, %p215
      %p217 = scmp.ne.s32.totalorder %s209, %s212
      %p218 = scmp.eq.s32.totalorder %s32, 0
      %p219 = por %p217, %p218
      %p220 = scmp.ne.s32.totalorder %s209, %s212
      %p221 = scmp.eq.s32.totalorder %s37, 3
      %p222 = por %p220, %p221
      %p223 = scmp.ne.s32.totalorder %s212, %s213
      %p224 = scmp.eq.s32.totalorder %s37, 0
      %p225 = por %p223, %p224
      %p226 = scmp.ne.s32.totalorder %s212, %s213
      %p227 = scmp.eq.s32.totalorder %s38, 3
      %p228 = por %p226, %p227
      %p230 = scmp.ne.s32.totalorder %s213, %s229
      %p231 = scmp.eq.s32.totalorder %s38, 0
      %p232 = por %p230, %p231
      %s233 = ssub.s32 %s32, %s39
      %p234 = scmp.eq.s32.totalorder %s233, 0
      %s236 = sadd.s32 %s235, 1
      %s237 = scalar_select %p234, %s235, %s236
      %p240 = pneg %p234
      %p241 = scmp.eq.s32.totalorder %s32, 3
      %p242 = por %p240, %p241
      %p243 = scmp.ne.s32.totalorder %s235, %s238
      %p244 = scmp.eq.s32.totalorder %s32, 0
      %p245 = por %p243, %p244
      %p246 = scmp.ne.s32.totalorder %s235, %s238
      %p247 = scmp.eq.s32.totalorder %s37, 3
      %p248 = por %p246, %p247
      %p249 = scmp.ne.s32.totalorder %s238, %s239
      %p250 = scmp.eq.s32.totalorder %s37, 0
      %p251 = por %p249, %p250
      %p252 = scmp.ne.s32.totalorder %s238, %s239
      %p253 = scmp.eq.s32.totalorder %s38, 3
      %p254 = por %p252, %p253
      %p256 = scmp.ne.s32.totalorder %s239, %s255
      %p257 = scmp.eq.s32.totalorder %s38, 0
      %p258 = por %p256, %p257
      %s259 = ssub.s32 %s32, %s39
      %p260 = scmp.eq.s32.totalorder %s259, 0
      %s262 = sadd.s32 %s261, 1
      %s263 = scalar_select %p260, %s261, %s262
      %p266 = pneg %p260
      %p267 = scmp.eq.s32.totalorder %s32, 3
      %p268 = por %p266, %p267
      %p269 = scmp.ne.s32.totalorder %s261, %s264
      %p270 = scmp.eq.s32.totalorder %s32, 0
      %p271 = por %p269, %p270
      %p272 = scmp.ne.s32.totalorder %s261, %s264
      %p273 = scmp.eq.s32.totalorder %s37, 3
      %p274 = por %p272, %p273
      %p275 = scmp.ne.s32.totalorder %s264, %s265
      %p276 = scmp.eq.s32.totalorder %s37, 0
      %p277 = por %p275, %p276
      %p278 = scmp.ne.s32.totalorder %s264, %s265
      %p279 = scmp.eq.s32.totalorder %s38, 3
      %p280 = por %p278, %p279
      %p282 = scmp.ne.s32.totalorder %s265, %s281
      %p283 = scmp.eq.s32.totalorder %s38, 0
      %p284 = por %p282, %p283
      %s285 = ssub.s32 %s32, %s39
      %p286 = scmp.eq.s32.totalorder %s285, 0
      %s288 = sadd.s32 %s287, 1
      %s289 = scalar_select %p286, %s287, %s288
      %p292 = pneg %p286
      %p293 = scmp.eq.s32.totalorder %s32, 3
      %p294 = por %p292, %p293
      %p295 = scmp.ne.s32.totalorder %s287, %s290
      %p296 = scmp.eq.s32.totalorder %s32, 0
      %p297 = por %p295, %p296
      %p298 = scmp.ne.s32.totalorder %s287, %s290
      %p299 = scmp.eq.s32.totalorder %s37, 3
      %p300 = por %p298, %p299
      %p301 = scmp.ne.s32.totalorder %s290, %s291
      %p302 = scmp.eq.s32.totalorder %s37, 0
      %p303 = por %p301, %p302
      %p304 = scmp.ne.s32.totalorder %s290, %s291
      %p305 = scmp.eq.s32.totalorder %s38, 3
      %p306 = por %p304, %p305
      %p308 = scmp.ne.s32.totalorder %s291, %s307
      %p309 = scmp.eq.s32.totalorder %s38, 0
      %p310 = por %p308, %p309
      %s311 = ssub.s32 %s32, %s39
      %p312 = scmp.eq.s32.totalorder %s311, 0
      %s314 = sadd.s32 %s313, 1
      %s315 = scalar_select %p312, %s313, %s314
      %p318 = pneg %p312
      %p319 = scmp.eq.s32.totalorder %s32, 3
      %p320 = por %p318, %p319
      %p321 = scmp.ne.s32.totalorder %s313, %s316
      %p322 = scmp.eq.s32.totalorder %s32, 0
      %p323 = por %p321, %p322
      %p324 = scmp.ne.s32.totalorder %s313, %s316
      %p325 = scmp.eq.s32.totalorder %s37, 3
      %p326 = por %p324, %p325
      %p327 = scmp.ne.s32.totalorder %s316, %s317
      %p328 = scmp.eq.s32.totalorder %s37, 0
      %p329 = por %p327, %p328
      %p330 = scmp.ne.s32.totalorder %s316, %s317
      %p331 = scmp.eq.s32.totalorder %s38, 3
      %p332 = por %p330, %p331
      %p334 = scmp.ne.s32.totalorder %s317, %s333
      %p335 = scmp.eq.s32.totalorder %s38, 0
      %p336 = por %p334, %p335
      %p337 = scmp.le.s32.totalorder 1, %s32
      %p338 = scmp.lt.s32.totalorder %s32, 5
      %p339 = pnand %p337, %p338
      %p340 = pneg %p339
      // Predicated region
      $region9: #{tpu_custom_call.1} parent=5 // pred_check
        _
      $region10: #{tpu_custom_call.1} parent=5 // pred_check_branch
        %342 = sbr.rel (%p339) target = $region12
      $region11: #{tpu_custom_call.1} parent=5 // pred_region
        %s343 = ssub.s32 %s32, 1
        // Predicated region
        $region13: #{tpu_custom_call.1} parent=11 // pred_check
          %p344 = pneg %p53
        $region14: #{tpu_custom_call.1} parent=11 // pred_check_branch
          %346 = sbr.rel (%p344) target = $region16
        $region15: #{tpu_custom_call.1} parent=11 // pred_region
          %s348 = ssub.s32 128, 128
          %349 = vsyncadd [#allocation3], %s348
          %s351 = sshll.u32 [#allocation2], 4
          %s352 = int_to_ptr.vmem [resolvable:$true] %s351
          %354 = dma.hbm_to_vmem [thread:$0]  %s0, 128, %s352, [#allocation3]
        $region16: #{tpu_custom_call.1} parent=11 // pred_fallthru
          _
        // Predicated region
        $region17: #{tpu_custom_call.1} parent=11 // pred_check
          %p355 = pneg %p74
        $region18: #{tpu_custom_call.1} parent=11 // pred_check_branch
          %357 = sbr.rel (%p355) target = $region20
        $region19: #{tpu_custom_call.1} parent=11 // pred_region
          %s359 = ssub.s32 16, 16
          %360 = vsyncadd [#allocation6], %s359
          %s362 = sshll.u32 [#allocation5], 4
          %s363 = int_to_ptr.vmem [resolvable:$true] %s362
          %365 = dma.hbm_to_vmem [thread:$0]  %s1, 16, %s363, [#allocation6]
        $region20: #{tpu_custom_call.1} parent=11 // pred_fallthru
          _
        // Predicated region
        $region21: #{tpu_custom_call.1} parent=11 // pred_check
          %p366 = pneg %p95
        $region22: #{tpu_custom_call.1} parent=11 // pred_check_branch
          %368 = sbr.rel (%p366) target = $region24
        $region23: #{tpu_custom_call.1} parent=11 // pred_region
          %s370 = ssub.s32 16, 16
          %371 = vsyncadd [#allocation6], %s370
          %s373 = sshll.u32 [#allocation7], 4
          %s374 = int_to_ptr.vmem [resolvable:$true] %s373
          %376 = dma.hbm_to_vmem [thread:$0]  %s2, 16, %s374, [#allocation6]
        $region24: #{tpu_custom_call.1} parent=11 // pred_fallthru
          _
      $region12: #{tpu_custom_call.1} parent=5 // pred_fallthru
        _
      %p377 = scmp.lt.s32.totalorder %s32, 4
      // Predicated region
      $region25: #{tpu_custom_call.1} parent=5 // pred_check
        %p378 = pneg %p377
      $region26: #{tpu_custom_call.1} parent=5 // pred_check_branch
        %380 = sbr.rel (%p378) target = $region28
      $region27: #{tpu_custom_call.1} parent=5 // pred_region
        // Predicated region
        $region29: #{tpu_custom_call.1} parent=27 // pred_check
          %p381 = pneg %p115
        $region30: #{tpu_custom_call.1} parent=27 // pred_check_branch
          %383 = sbr.rel (%p381) target = $region32
        $region31: #{tpu_custom_call.1} parent=27 // pred_region
          %s384 = sand.u32 %s32, 1
          %s385 = scalar_lea.sflag [#allocation9], %s384
          %s386 = sand.u32 %s105, 1
          %s387 = smul.addr %s386, 16
          %s388 = scalar_lea.vmem [#allocation8], %s387
          %s390 = ssub.s32 256, 256
          %391 = vsyncadd %s385, %s390
          %s392 = smul.addr %s32, 4
          %s393 = smul.addr %s392, 64
          %s394 = scalar_lea.hbm %s3, %s393
          %s395 = sshll.u32 %s388, 4
          %s396 = int_to_ptr.vmem [resolvable:$true] %s395
          %401 = dma.hbm_to_vmem [thread:$0]  %s394, 256, %s396, %s385, 64, 64, 4
        $region32: #{tpu_custom_call.1} parent=27 // pred_fallthru
          _
        // Predicated region
        $region33: #{tpu_custom_call.1} parent=27 // pred_check
          %p402 = pneg %p141
        $region34: #{tpu_custom_call.1} parent=27 // pred_check_branch
          %404 = sbr.rel (%p402) target = $region36
        $region35: #{tpu_custom_call.1} parent=27 // pred_region
          %p405 = scmp.lt.s32.totalorder %s32, 3
          %s406 = scalar_select %p405, %s32, 3
          %s407 = scalar_lea.vmem %s4, %s406
        $region36: #{tpu_custom_call.1} parent=27 // pred_fallthru
          _
        // Predicated region
        $region37: #{tpu_custom_call.1} parent=27 // pred_check
          %p408 = pneg %p167
        $region38: #{tpu_custom_call.1} parent=27 // pred_check_branch
          %410 = sbr.rel (%p408) target = $region40
        $region39: #{tpu_custom_call.1} parent=27 // pred_region
          %s411 = sand.u32 %s32, 1
          %s412 = scalar_lea.sflag [#allocation9], %s411
          %s413 = sand.u32 %s157, 1
          %s414 = smul.addr %s413, 16
          %s415 = scalar_lea.vmem [#allocation10], %s414
          %s417 = ssub.s32 256, 256
          %418 = vsyncadd %s412, %s417
          %s419 = smul.addr %s32, 4
          %s420 = smul.addr %s419, 64
          %s421 = scalar_lea.hbm %s5, %s420
          %s422 = sshll.u32 %s415, 4
          %s423 = int_to_ptr.vmem [resolvable:$true] %s422
          %428 = dma.hbm_to_vmem [thread:$0]  %s421, 256, %s423, %s412, 64, 64, 4
        $region40: #{tpu_custom_call.1} parent=27 // pred_fallthru
          _
        // Predicated region
        $region41: #{tpu_custom_call.1} parent=27 // pred_check
          %p429 = pneg %p193
        $region42: #{tpu_custom_call.1} parent=27 // pred_check_branch
          %431 = sbr.rel (%p429) target = $region44
        $region43: #{tpu_custom_call.1} parent=27 // pred_region
          %p432 = scmp.lt.s32.totalorder %s32, 3
          %s433 = scalar_select %p432, %s32, 3
          %s434 = scalar_lea.vmem %s6, %s433
        $region44: #{tpu_custom_call.1} parent=27 // pred_fallthru
          _
        // Predicated region
        $region45: #{tpu_custom_call.1} parent=27 // pred_check
          %p435 = pneg %p219
        $region46: #{tpu_custom_call.1} parent=27 // pred_check_branch
          %437 = sbr.rel (%p435) target = $region48
        $region47: #{tpu_custom_call.1} parent=27 // pred_region
          %s438 = sand.u32 %s209, 1
          %s439 = scalar_lea.sflag [#allocation12], %s438
          %s440 = sand.u32 %s209, 1
          %s441 = smul.addr %s440, 16
          %s442 = scalar_lea.vmem [#allocation11], %s441
          %s444 = ssub.s32 256, 256
          %445 = vsyncadd %s439, %s444
          %s446 = smul.addr %s32, 4
          %s447 = smul.addr %s446, 64
          %s448 = scalar_lea.hbm %s7, %s447
          %s449 = sshll.u32 %s442, 4
          %s450 = int_to_ptr.vmem [resolvable:$true] %s449
          %455 = dma.hbm_to_vmem [thread:$0]  %s448, 256, %s450, %s439, 64, 64, 4
        $region48: #{tpu_custom_call.1} parent=27 // pred_fallthru
          _
        // Predicated region
        $region49: #{tpu_custom_call.1} parent=27 // pred_check
          %p456 = pneg %p245
        $region50: #{tpu_custom_call.1} parent=27 // pred_check_branch
          %458 = sbr.rel (%p456) target = $region52
        $region51: #{tpu_custom_call.1} parent=27 // pred_region
          %p459 = scmp.lt.s32.totalorder %s32, 3
          %s460 = scalar_select %p459, %s32, 3
          %s461 = scalar_lea.vmem %s8, %s460
        $region52: #{tpu_custom_call.1} parent=27 // pred_fallthru
          _
      $region28: #{tpu_custom_call.1} parent=5 // pred_fallthru
        _
      %p462 = scmp.le.s32.totalorder 1, %s32
      %p463 = scmp.lt.s32.totalorder %s32, 5
      %p464 = pnand %p462, %p463
      %p465 = pneg %p464
      // Predicated region
      $region53: #{tpu_custom_call.1} parent=5 // pred_check
        _
      $region54: #{tpu_custom_call.1} parent=5 // pred_check_branch
        %467 = sbr.rel (%p464) target = $region56
      $region55: #{tpu_custom_call.1} parent=5 // pred_region
        %s468 = ssub.s32 %s32, 1
        // Predicated region
        $region57: #{tpu_custom_call.1} parent=55 // pred_check
          %p469 = pneg %p53
        $region58: #{tpu_custom_call.1} parent=55 // pred_check_branch
          %471 = sbr.rel (%p469) target = $region60
        $region59: #{tpu_custom_call.1} parent=55 // pred_region
          %472 = dma.done [#allocation3], 128
        $region60: #{tpu_custom_call.1} parent=55 // pred_fallthru
          _
        // Predicated region
        $region61: #{tpu_custom_call.1} parent=55 // pred_check
          %p473 = pneg %p74
        $region62: #{tpu_custom_call.1} parent=55 // pred_check_branch
          %475 = sbr.rel (%p473) target = $region64
        $region63: #{tpu_custom_call.1} parent=55 // pred_region
          %476 = dma.done [#allocation6], 16
        $region64: #{tpu_custom_call.1} parent=55 // pred_fallthru
          _
        // Predicated region
        $region65: #{tpu_custom_call.1} parent=55 // pred_check
          %p477 = pneg %p95
        $region66: #{tpu_custom_call.1} parent=55 // pred_check_branch
          %479 = sbr.rel (%p477) target = $region68
        $region67: #{tpu_custom_call.1} parent=55 // pred_region
          %480 = dma.done [#allocation6], 16
        $region68: #{tpu_custom_call.1} parent=55 // pred_fallthru
          _
        %s481 = sand.u32 %s37, 1
        %s482 = scalar_lea.sflag [#allocation9], %s481
        %s483 = sand.u32 %s108, 1
        %s484 = smul.addr %s483, 16
        %s485 = scalar_lea.vmem [#allocation8], %s484
        // Predicated region
        $region69: #{tpu_custom_call.1} parent=55 // pred_check
          %p486 = pneg %p121
        $region70: #{tpu_custom_call.1} parent=55 // pred_check_branch
          %488 = sbr.rel (%p486) target = $region72
        $region71: #{tpu_custom_call.1} parent=55 // pred_region
          %489 = dma.done %s482, 256
        $region72: #{tpu_custom_call.1} parent=55 // pred_fallthru
          _
        %s490 = sand.u32 %s37, 1
        %s491 = scalar_lea.sflag [#allocation9], %s490
        %s492 = sand.u32 %s160, 1
        %s493 = smul.addr %s492, 16
        %s494 = scalar_lea.vmem [#allocation10], %s493
        // Predicated region
        $region73: #{tpu_custom_call.1} parent=55 // pred_check
          %p495 = pneg %p173
        $region74: #{tpu_custom_call.1} parent=55 // pred_check_branch
          %497 = sbr.rel (%p495) target = $region76
        $region75: #{tpu_custom_call.1} parent=55 // pred_region
          %498 = dma.done %s491, 256
        $region76: #{tpu_custom_call.1} parent=55 // pred_fallthru
          _
        %s499 = sand.u32 %s212, 1
        %s500 = scalar_lea.sflag [#allocation12], %s499
        %s501 = sand.u32 %s212, 1
        %s502 = smul.addr %s501, 16
        %s503 = scalar_lea.vmem [#allocation11], %s502
        // Predicated region
        $region77: #{tpu_custom_call.1} parent=55 // pred_check
          %p504 = pneg %p225
        $region78: #{tpu_custom_call.1} parent=55 // pred_check_branch
          %506 = sbr.rel (%p504) target = $region80
        $region79: #{tpu_custom_call.1} parent=55 // pred_region
          %507 = dma.done %s500, 256
        $region80: #{tpu_custom_call.1} parent=55 // pred_fallthru
          _
        %p508 = pneg %p53
        %p509 = pneg %p50
        %p510 = pneg %p74
        %p511 = pneg %p71
        %p512 = pneg %p95
        %p513 = pneg %p92
        %s514 = sand.u32 %s37, 1
        %s515 = scalar_lea.sflag [#allocation9], %s514
        %s516 = sand.u32 %s108, 1
        %s517 = smul.addr %s516, 16
        %s518 = scalar_lea.vmem [#allocation8], %s517
        %p519 = pneg %p121
        %p520 = pneg %p118
        %p521 = scmp.lt.s32.totalorder %s37, 3
        %s522 = scalar_select %p521, %s37, 3
        %s523 = scalar_lea.vmem %s4, %s522
        %p524 = pneg %p147
        %p525 = pneg %p144
        %s526 = sand.u32 %s37, 1
        %s527 = scalar_lea.sflag [#allocation9], %s526
        %s528 = sand.u32 %s160, 1
        %s529 = smul.addr %s528, 16
        %s530 = scalar_lea.vmem [#allocation10], %s529
        %p531 = pneg %p173
        %p532 = pneg %p170
        %p533 = scmp.lt.s32.totalorder %s37, 3
        %s534 = scalar_select %p533, %s37, 3
        %s535 = scalar_lea.vmem %s6, %s534
        %p536 = pneg %p199
        %p537 = pneg %p196
        %s538 = sand.u32 %s212, 1
        %s539 = scalar_lea.sflag [#allocation12], %s538
        %s540 = sand.u32 %s212, 1
        %s541 = smul.addr %s540, 16
        %s542 = scalar_lea.vmem [#allocation11], %s541
        %p543 = pneg %p225
        %p544 = pneg %p222
        %p545 = scmp.lt.s32.totalorder %s37, 3
        %s546 = scalar_select %p545, %s37, 3
        %s547 = scalar_lea.vmem %s8, %s546
        %p548 = pneg %p251
        %p549 = pneg %p248
        %p550 = pneg %p277
        %p551 = pneg %p274
        %s552 = sand.u32 %s264, 1
        %s553 = scalar_lea.sflag [#allocation4], %s552
        %s554 = sand.u32 %s264, 1
        %s555 = smul.addr %s554, 4
        %s556 = scalar_lea.vmem [#allocation13], %s555
        %p557 = pneg %p303
        %p558 = pneg %p300
        %s559 = sand.u32 %s37, 1
        %s560 = scalar_lea.sflag [#allocation15], %s559
        %s561 = sand.u32 %s290, 1
        %s562 = smul.addr %s561, 4
        %s563 = scalar_lea.vmem [#allocation14], %s562
        %p564 = pneg %p329
        %p565 = pneg %p326
        %s566 = sand.u32 %s37, 1
        %s567 = scalar_lea.sflag [#allocation15], %s566
        %s568 = sand.u32 %s316, 1
        %s569 = smul.addr %s568, 4
        %s570 = scalar_lea.vmem [#allocation16], %s569
        %p571 = scmp.lt.s32.totalorder %s37, 3
        %s572 = scalar_select %p571, %s37, 3
        %s573 = scalar_lea.vmem %s4, %s572
        %p574 = scmp.lt.s32.totalorder %s37, 3
        %s575 = scalar_select %p574, %s37, 3
        %s576 = scalar_lea.vmem %s6, %s575
        %p577 = scmp.lt.s32.totalorder %s37, 3
        %s578 = scalar_select %p577, %s37, 3
        %s579 = scalar_lea.vmem %s8, %s578
        %v581 = vld [vmem:[#allocation2] sm:$0xff]
        %v582 = vld [vmem:[#allocation5] sm:$0x1]
        %v583 = vld [vmem:[#allocation7] sm:$0x1]
        %vm584 = vcmask 261120
        %v585 = vsel %vm584, %v581, 0.0
        %586 = vadd.xlane.f32.xlu0 %v585
        %v587 = vpop.xlane.xlu0 %586
        %v588 = vrcp.pop 32.0
        %v589 = vmul.f32 %v587, %v588
        %v590 = vsub.f32 %v581, %v589
        %v591 = vmul.f32 %v590, %v590
        %v592 = vsel %vm584, %v591, 0.0
        %593 = vadd.xlane.f32.xlu0 %v592
        %v594 = vpop.xlane.xlu0 %593
        %v595 = vmul.f32 %v594, %v588
        %v596 = vadd.f32 %v595, 1e-05
        %v597 = vrsqrt.pop %v596
        %v598 = vmul.f32 %v590, %v597
        %v600 = vlaneseq
        %v601 = vshrl.u32 %v600, 7
        %v602 = vsub.s32 0, %v601
        %v603 = vrot.slane %v582, %v602
        %v605 = vmul.f32 %v598, %v603
        %v607 = vlaneseq
        %v608 = vshrl.u32 %v607, 7
        %v609 = vsub.s32 0, %v608
        %v610 = vrot.slane %v583, %v609
        %v612 = vadd.f32 %v605, %v610
        %v613 = vpack.c.bf16 %v612, %v612
        %v614 = vld [vmem:[%s485] sm:$0xf]
        %v615 = vld [vmem:[%s485 + $0x4] sm:$0xf]
        %v616 = vld [vmem:[%s485 + $0x8] sm:$0xf]
        %v617 = vld [vmem:[%s485 + $0xc] sm:$0xf]
        %v618 = vld [vmem:[%s573] sm:$0x1]
        %v620 = vlaneseq
        %v621 = vshrl.u32 %v620, 7
        %v622 = vsub.s32 0, %v621
        %v623 = vrot.slane %v618, %v622
        %v629 = vunpack.c.l.b16 %v614
        %v630 = vunpack.c.l.b16 %v615
        %v631 = vunpack.c.l.b16 %v616
        %v632 = vunpack.c.l.b16 %v617
        %v633 = vpack.c.b16 %v630, %v629
        %v634 = vpack.c.b16 %v632, %v631
        %v638 = vsel %vm584, %v613, 0
        %640 = vmatprep.subr.bf16.mxu0 0
        %641 = vmatpush1.bf16.msra.mxu0 0
        %642 = vmatprep.subr.bf16.mxu0 0
        %643 = vmatpush1.bf16.msra.mxu0 0
        %644 = vmatprep.subr.bf16.mxu0 0
        %645 = vmatpush1.bf16.msra.mxu0 0
        %646 = vmatprep.subr.bf16.mxu0 0
        %647 = vmatpush1.bf16.msra.mxu0 0
        %648 = vmatprep.subr.bf16.mxu0 0
        %649 = vmatpush1.bf16.msra.mxu0 0
        %650 = vmatprep.subr.bf16.mxu0 0
        %651 = vmatpush1.bf16.msra.mxu0 0
        %652 = vmatprep.subr.bf16.mxu0 0
        %653 = vmatpush1.bf16.msra.mxu0 %v634
        %654 = vmatprep.subr.bf16.mxu0 0
        %655 = vmatpush1.bf16.msra.mxu0 %v633
        %656 = vmatprep.subr.bf16.mxu0 0
        %657 = vmatpush2.bf16.msra.mxu0 0
        %658 = vmatprep.subr.bf16.mxu0 0
        %659 = vmatpush2.bf16.msra.mxu0 0
        %660 = vmatprep.subr.bf16.mxu0 0
        %661 = vmatpush2.bf16.msra.mxu0 0
        %662 = vmatprep.subr.bf16.mxu0 0
        %663 = vmatpush2.bf16.msra.mxu0 0
        %664 = vmatprep.subr.bf16.mxu0 0
        %665 = vmatpush2.bf16.msra.mxu0 0
        %666 = vmatprep.subr.bf16.mxu0 0
        %667 = vmatpush2.bf16.msra.mxu0 0
        %668 = vmatprep.subr.bf16.mxu0 0
        %669 = vmatpush2.bf16.msra.mxu0 0
        %670 = vmatprep.subr.bf16.mxu0 0
        %671 = vmatpush2.bf16.msra.mxu0 0
        %672 = vmatprep.mubr.bf16.mxu0 0
        %673 = vmatmul.mubr.bf16.gmra.mxu0 %v638
        %v674 = vpop.f32.mrf.mxu0
        %v675 = vadd.f32 %v623, %v674
        %v676 = vpop.f32.mrf.mxu0
        %v677 = vpop.f32.mrf.mxu0
        %v678 = vpop.f32.mrf.mxu0
        %679 = vdwg.mxu0
        %v680 = vpack.c.bf16 %v675, %v675
        %vm681 = vcmask 257024
        %682 = vst.msk [vmem:[%s556] sm:$0xf] %vm681, %v680
        %v683 = vld [vmem:[%s494] sm:$0xf]
        %v684 = vld [vmem:[%s494 + $0x4] sm:$0xf]
        %v685 = vld [vmem:[%s494 + $0x8] sm:$0xf]
        %v686 = vld [vmem:[%s494 + $0xc] sm:$0xf]
        %v687 = vld [vmem:[%s576] sm:$0x1]
        %v689 = vlaneseq
        %v690 = vshrl.u32 %v689, 7
        %v691 = vsub.s32 0, %v690
        %v692 = vrot.slane %v687, %v691
        %v698 = vunpack.c.l.b16 %v683
        %v699 = vunpack.c.l.b16 %v684
        %v700 = vunpack.c.l.b16 %v685
        %v701 = vunpack.c.l.b16 %v686
        %v702 = vpack.c.b16 %v699, %v698
        %v703 = vpack.c.b16 %v701, %v700
        %706 = vmatprep.subr.bf16.mxu0 0
        %707 = vmatpush1.bf16.msra.mxu0 0
        %708 = vmatprep.subr.bf16.mxu0 0
        %709 = vmatpush1.bf16.msra.mxu0 0
        %710 = vmatprep.subr.bf16.mxu0 0
        %711 = vmatpush1.bf16.msra.mxu0 0
        %712 = vmatprep.subr.bf16.mxu0 0
        %713 = vmatpush1.bf16.msra.mxu0 0
        %714 = vmatprep.subr.bf16.mxu0 0
        %715 = vmatpush1.bf16.msra.mxu0 0
        %716 = vmatprep.subr.bf16.mxu0 0
        %717 = vmatpush1.bf16.msra.mxu0 0
        %718 = vmatprep.subr.bf16.mxu0 0
        %719 = vmatpush1.bf16.msra.mxu0 %v703
        %720 = vmatprep.subr.bf16.mxu0 0
        %721 = vmatpush1.bf16.msra.mxu0 %v702
        %722 = vmatprep.subr.bf16.mxu0 0
        %723 = vmatpush2.bf16.msra.mxu0 0
        %724 = vmatprep.subr.bf16.mxu0 0
        %725 = vmatpush2.bf16.msra.mxu0 0
        %726 = vmatprep.subr.bf16.mxu0 0
        %727 = vmatpush2.bf16.msra.mxu0 0
        %728 = vmatprep.subr.bf16.mxu0 0
        %729 = vmatpush2.bf16.msra.mxu0 0
        %730 = vmatprep.subr.bf16.mxu0 0
        %731 = vmatpush2.bf16.msra.mxu0 0
        %732 = vmatprep.subr.bf16.mxu0 0
        %733 = vmatpush2.bf16.msra.mxu0 0
        %734 = vmatprep.subr.bf16.mxu0 0
        %735 = vmatpush2.bf16.msra.mxu0 0
        %736 = vmatprep.subr.bf16.mxu0 0
        %737 = vmatpush2.bf16.msra.mxu0 0
        %738 = vmatprep.mubr.bf16.mxu0 0
        %739 = vmatmul.mubr.bf16.gmra.mxu0 %v638
        %v740 = vpop.f32.mrf.mxu0
        %v741 = vadd.f32 %v692, %v740
        %v742 = vpop.f32.mrf.mxu0
        %v743 = vpop.f32.mrf.mxu0
        %v744 = vpop.f32.mrf.mxu0
        %745 = vdwg.mxu0
        %v746 = vpack.c.bf16 %v741, %v741
        %747 = vst.msk [vmem:[%s563] sm:$0xf] %vm681, %v746
        %v748 = vld [vmem:[%s503] sm:$0xf]
        %v749 = vld [vmem:[%s503 + $0x4] sm:$0xf]
        %v750 = vld [vmem:[%s503 + $0x8] sm:$0xf]
        %v751 = vld [vmem:[%s503 + $0xc] sm:$0xf]
        %v752 = vld [vmem:[%s579] sm:$0x1]
        %v754 = vlaneseq
        %v755 = vshrl.u32 %v754, 7
        %v756 = vsub.s32 0, %v755
        %v757 = vrot.slane %v752, %v756
        %v763 = vunpack.c.l.b16 %v748
        %v764 = vunpack.c.l.b16 %v749
        %v765 = vunpack.c.l.b16 %v750
        %v766 = vunpack.c.l.b16 %v751
        %v767 = vpack.c.b16 %v764, %v763
        %v768 = vpack.c.b16 %v766, %v765
        %771 = vmatprep.subr.bf16.mxu0 0
        %772 = vmatpush1.bf16.msra.mxu0 0
        %773 = vmatprep.subr.bf16.mxu0 0
        %774 = vmatpush1.bf16.msra.mxu0 0
        %775 = vmatprep.subr.bf16.mxu0 0
        %776 = vmatpush1.bf16.msra.mxu0 0
        %777 = vmatprep.subr.bf16.mxu0 0
        %778 = vmatpush1.bf16.msra.mxu0 0
        %779 = vmatprep.subr.bf16.mxu0 0
        %780 = vmatpush1.bf16.msra.mxu0 0
        %781 = vmatprep.subr.bf16.mxu0 0
        %782 = vmatpush1.bf16.msra.mxu0 0
        %783 = vmatprep.subr.bf16.mxu0 0
        %784 = vmatpush1.bf16.msra.mxu0 %v768
        %785 = vmatprep.subr.bf16.mxu0 0
        %786 = vmatpush1.bf16.msra.mxu0 %v767
        %787 = vmatprep.subr.bf16.mxu0 0
        %788 = vmatpush2.bf16.msra.mxu0 0
        %789 = vmatprep.subr.bf16.mxu0 0
        %790 = vmatpush2.bf16.msra.mxu0 0
        %791 = vmatprep.subr.bf16.mxu0 0
        %792 = vmatpush2.bf16.msra.mxu0 0
        %793 = vmatprep.subr.bf16.mxu0 0
        %794 = vmatpush2.bf16.msra.mxu0 0
        %795 = vmatprep.subr.bf16.mxu0 0
        %796 = vmatpush2.bf16.msra.mxu0 0
        %797 = vmatprep.subr.bf16.mxu0 0
        %798 = vmatpush2.bf16.msra.mxu0 0
        %799 = vmatprep.subr.bf16.mxu0 0
        %800 = vmatpush2.bf16.msra.mxu0 0
        %801 = vmatprep.subr.bf16.mxu0 0
        %802 = vmatpush2.bf16.msra.mxu0 0
        %803 = vmatprep.mubr.bf16.mxu0 0
        %804 = vmatmul.mubr.bf16.gmra.mxu0 %v638
        %v805 = vpop.f32.mrf.mxu0
        %v806 = vadd.f32 %v757, %v805
        %v807 = vpop.f32.mrf.mxu0
        %v808 = vpop.f32.mrf.mxu0
        %v809 = vpop.f32.mrf.mxu0
        %810 = vdwg.mxu0
        %v811 = vpack.c.bf16 %v806, %v806
        %812 = vst.msk [vmem:[%s570] sm:$0xf] %vm681, %v811
        %s813 = sand.u32 %s264, 1
        %s814 = scalar_lea.sflag [#allocation4], %s813
        %s815 = sand.u32 %s264, 1
        %s816 = smul.addr %s815, 4
        %s817 = scalar_lea.vmem [#allocation13], %s816
        %s818 = sand.u32 %s37, 1
        %s819 = scalar_lea.sflag [#allocation15], %s818
        %s820 = sand.u32 %s290, 1
        %s821 = smul.addr %s820, 4
        %s822 = scalar_lea.vmem [#allocation14], %s821
        %s823 = sand.u32 %s37, 1
        %s824 = scalar_lea.sflag [#allocation15], %s823
        %s825 = sand.u32 %s316, 1
        %s826 = smul.addr %s825, 4
        %s827 = scalar_lea.vmem [#allocation16], %s826
        // Predicated region
        $region81: #{tpu_custom_call.1} parent=55 // pred_check
          %p828 = pneg %p274
        $region82: #{tpu_custom_call.1} parent=55 // pred_check_branch
          %830 = sbr.rel (%p828) target = $region84
        $region83: #{tpu_custom_call.1} parent=55 // pred_region
          %s832 = ssub.s32 64, 64
          %833 = vsyncadd %s814, %s832
          %s834 = smul.addr %s37, 64
          %s835 = scalar_lea.hbm %s9, %s834
          %s837 = sshll.u32 %s817, 4
          %s838 = int_to_ptr.vmem [resolvable:$true] %s837
          %840 = dma.vmem_to_hbm [thread:$0]  %s838, 64, %s835, %s814
        $region84: #{tpu_custom_call.1} parent=55 // pred_fallthru
          _
        // Predicated region
        $region85: #{tpu_custom_call.1} parent=55 // pred_check
          %p841 = pneg %p300
        $region86: #{tpu_custom_call.1} parent=55 // pred_check_branch
          %843 = sbr.rel (%p841) target = $region88
        $region87: #{tpu_custom_call.1} parent=55 // pred_region
          %s845 = ssub.s32 64, 64
          %846 = vsyncadd %s819, %s845
          %s847 = smul.addr %s37, 64
          %s848 = scalar_lea.hbm %s10, %s847
          %s850 = sshll.u32 %s822, 4
          %s851 = int_to_ptr.vmem [resolvable:$true] %s850
          %853 = dma.vmem_to_hbm [thread:$0]  %s851, 64, %s848, %s819
        $region88: #{tpu_custom_call.1} parent=55 // pred_fallthru
          _
        // Predicated region
        $region89: #{tpu_custom_call.1} parent=55 // pred_check
          %p854 = pneg %p326
        $region90: #{tpu_custom_call.1} parent=55 // pred_check_branch
          %856 = sbr.rel (%p854) target = $region92
        $region91: #{tpu_custom_call.1} parent=55 // pred_region
          %s858 = ssub.s32 64, 64
          %859 = vsyncadd %s824, %s858
          %s860 = smul.addr %s37, 64
          %s861 = scalar_lea.hbm %s11, %s860
          %s863 = sshll.u32 %s827, 4
          %s864 = int_to_ptr.vmem [resolvable:$true] %s863
          %866 = dma.vmem_to_hbm [thread:$0]  %s864, 64, %s861, %s824
        $region92: #{tpu_custom_call.1} parent=55 // pred_fallthru
          _
      $region56: #{tpu_custom_call.1} parent=5 // pred_fallthru
        _
      %p867 = scmp.le.s32.totalorder 2, %s32
      // Predicated region
      $region93: #{tpu_custom_call.1} parent=5 // pred_check
        %p868 = pneg %p867
      $region94: #{tpu_custom_call.1} parent=5 // pred_check_branch
        %870 = sbr.rel (%p868) target = $region96
      $region95: #{tpu_custom_call.1} parent=5 // pred_region
        %s871 = ssub.s32 %s32, 2
        // Predicated region
        $region97: #{tpu_custom_call.1} parent=95 // pred_check
          %p872 = pneg %p280
        $region98: #{tpu_custom_call.1} parent=95 // pred_check_branch
          %874 = sbr.rel (%p872) target = $region100
        $region99: #{tpu_custom_call.1} parent=95 // pred_region
          %s875 = sand.u32 %s265, 1
          %s876 = scalar_lea.sflag [#allocation4], %s875
          %s877 = sand.u32 %s265, 1
          %s878 = smul.addr %s877, 4
          %s879 = scalar_lea.vmem [#allocation13], %s878
          %880 = dma.done %s876, 64
        $region100: #{tpu_custom_call.1} parent=95 // pred_fallthru
          _
        // Predicated region
        $region101: #{tpu_custom_call.1} parent=95 // pred_check
          %p881 = pneg %p306
        $region102: #{tpu_custom_call.1} parent=95 // pred_check_branch
          %883 = sbr.rel (%p881) target = $region104
        $region103: #{tpu_custom_call.1} parent=95 // pred_region
          %s884 = sand.u32 %s38, 1
          %s885 = scalar_lea.sflag [#allocation15], %s884
          %s886 = sand.u32 %s291, 1
          %s887 = smul.addr %s886, 4
          %s888 = scalar_lea.vmem [#allocation14], %s887
          %889 = dma.done %s885, 64
        $region104: #{tpu_custom_call.1} parent=95 // pred_fallthru
          _
        // Predicated region
        $region105: #{tpu_custom_call.1} parent=95 // pred_check
          %p890 = pneg %p332
        $region106: #{tpu_custom_call.1} parent=95 // pred_check_branch
          %892 = sbr.rel (%p890) target = $region108
        $region107: #{tpu_custom_call.1} parent=95 // pred_region
          %s893 = sand.u32 %s38, 1
          %s894 = scalar_lea.sflag [#allocation15], %s893
          %s895 = sand.u32 %s317, 1
          %s896 = smul.addr %s895, 4
          %s897 = scalar_lea.vmem [#allocation16], %s896
          %898 = dma.done %s894, 64
        $region108: #{tpu_custom_call.1} parent=95 // pred_fallthru
          _
      $region96: #{tpu_custom_call.1} parent=5 // pred_fallthru
        _
    $region6: #{tpu_custom_call.1} parent=1 // loop_footer
      %s36 = sadd.s32 1, %s32
    $region7: #{tpu_custom_call.1} parent=1 // loop_footer_branch
      %31 = sbr.rel target = $region3
    $region8: #{tpu_custom_call.1} parent=1 // loop_exit
      _
    %899 = vsyncpa [#allocation3], 1
    %s900 = scalar_lea.sflag [#allocation3], 1
    %901 = vsyncpa %s900, 1
    %902 = vsyncpa [#allocation6], 1
    %903 = vsyncpa [#allocation9], 1
    %s904 = scalar_lea.sflag [#allocation9], 1
    %905 = vsyncpa %s904, 1
    %906 = vsyncpa [#allocation12], 1
    %s907 = scalar_lea.sflag [#allocation12], 1
    %908 = vsyncpa %s907, 1
    %909 = vsyncpa [#allocation4], 1
    %s910 = scalar_lea.sflag [#allocation4], 1
    %911 = vsyncpa %s910, 1
    %912 = vsyncpa [#allocation15], 1
    %s913 = scalar_lea.sflag [#allocation15], 1
    %914 = vsyncpa %s913, 1

</llo_original>
